<compile_context>
chip_gen: v7x
topology: tpu7x:2x2x1
jax: 0.10.0
libtpu: 0.0.40
codegen_flags: <defaults>
</compile_context>

<pallas_src>
import math
from functools import partial

import jax
import jax.numpy as jnp
from jax.experimental import pallas as pl
from jax.experimental.pallas import tpu as pltpu


def _round_up(x, m):
    return ((x + m - 1) // m) * m


def _cdiv(a, b):
    return -(-a // b)


def _tpu_vmem_bytes():
    """Physical per-core VMEM capacity; conservative 64 MiB (v7x) fallback."""
    try:
        return int(pltpu.get_tpu_info().vmem_capacity_bytes)
    except Exception:
        return 64 * 1024 * 1024


def _swiglu_kernel(x_ref, w12_ref, b12_ref, w3_ref, b3_ref, o_ref, acc_ref, *, th):
    k = pl.program_id(1)

    @pl.when(k == 0)
    def _():
        acc_ref[...] = jnp.zeros_like(acc_ref)

    x = x_ref[...]                                            # (tm, in)
    # Two ref-sliced gate matmuls (the split at th is lane-aligned), with the
    # bias add and silu fused per half so only one (tm, th) f32 intermediate
    # is live at a time.
    x1 = jnp.dot(x, w12_ref[:, :th], preferred_element_type=jnp.float32)
    x1 = x1 + b12_ref[:, :th]
    gate = x1 * jax.nn.sigmoid(x1)                            # silu, f32 (EUP)
    x2 = jnp.dot(x, w12_ref[:, th:], preferred_element_type=jnp.float32)
    x2 = x2 + b12_ref[:, th:]
    gated = gate * x2                                         # (tm, th) f32

    # Accumulate the output-projection contribution of this hidden chunk.
    acc_ref[...] += jnp.dot(gated.astype(w3_ref.dtype), w3_ref[...],
                            preferred_element_type=jnp.float32)

    @pl.when(k == pl.num_programs(1) - 1)
    def _():
        o_ref[...] = (acc_ref[...] + b3_ref[...]).astype(o_ref.dtype)


def _pack_w12_3d(w1, b1, w2, b2, th):
    """Pack w1/w2 ([in, hidden]) into a 3-D [nh, in, 2*th] operand so the
    weight block for hidden-chunk k is a single contiguous DMA holding
    [w1_chunk_k | w2_chunk_k] along the lane axis (biases likewise)."""
    in_f, hidden = w1.shape
    hidden_p = _round_up(hidden, th)
    pad = hidden_p - hidden
    if pad:  # zero-padded hidden features gate to exactly zero -> no effect
        w1 = jnp.pad(w1, ((0, 0), (0, pad)))
        w2 = jnp.pad(w2, ((0, 0), (0, pad)))
        b1 = jnp.pad(b1, (0, pad))
        b2 = jnp.pad(b2, (0, pad))
    nh = hidden_p // th
    w12 = jnp.concatenate(
        [w1.reshape(in_f, nh, th).transpose(1, 0, 2),
         w2.reshape(in_f, nh, th).transpose(1, 0, 2)], axis=2)   # [nh, in, 2*th]
    b12 = jnp.concatenate(
        [b1.reshape(nh, 1, th), b2.reshape(nh, 1, th)], axis=2)  # [nh, 1, 2*th]
    return w12, b12, hidden_p, nh


def swiglu_pallas(x, w1, b1, w2, b2, w3, b3, *, tm=None, th=None):
    """x: [..., in]; w1,w2: [in, hidden]; w3: [hidden, out]; b1,b2: [hidden];
    b3: [out]. Returns [..., out]."""
    in_features = x.shape[-1]
    hidden = w1.shape[1]
    out_features = w3.shape[1]
    lead_shape = x.shape[:-1]
    M = int(math.prod(lead_shape)) if lead_shape else 1

    vmem_cap = _tpu_vmem_bytes()
    budget = max(24 * 1024 * 1024, vmem_cap - 16 * 1024 * 1024)

    # Tile defaults: larger on >=96 MiB VMEM chips (v5e/v6e), smaller on v7x.
    if th is None:
        th = 512 if vmem_cap >= 96 * 1024 * 1024 else 256
    if tm is None:
        tm = 512

    # Hidden chunk: multiple of 128 so the x1/x2 split is lane-aligned.
    th = _round_up(max(128, min(int(th), hidden)), 128)

    # Adaptive M tile: split M into roughly equal tiles (avoids padding a
    # whole extra tile for ragged M) and force >=2 tiles when M is large
    # enough so both v7x TensorCores get work on the "parallel" axis.
    tm_max = max(8, int(tm))
    n_m = max(1, _cdiv(M, tm_max))
    if M > 64:
        n_m = max(n_m, 2)
    tm = _round_up(_cdiv(M, n_m), 8)

    out_p = _round_up(out_features, 128)   # lane-dense output/acc stores
    dsz = jnp.dtype(x.dtype).itemsize
    wsz = jnp.dtype(w1.dtype).itemsize

    def _vmem_est(tm_, th_):
        return (2 * tm_ * in_features * dsz          # x tiles (double buffered)
                + 2 * in_features * 2 * th_ * wsz    # packed w12 tiles
                + 2 * 2 * th_ * wsz                  # packed b12 tiles
                + 2 * th_ * out_p * wsz              # w3 tiles
                + 2 * out_p * wsz                    # b3
                + 2 * tm_ * out_p * dsz              # out tiles
                + tm_ * out_p * 4                    # f32 accumulator scratch
                + 3 * tm_ * th_ * 4)                 # f32 intermediates

    # Shrink th (then tm) until double-buffered tiles fit physical VMEM (v7x).
    while _vmem_est(tm, th) > budget and th > 128:
        th = max(128, _round_up(th // 2, 128))
    while _vmem_est(tm, th) > budget and tm > 8:
        tm = max(8, _round_up(tm // 2, 8))

    # --- build operands ---------------------------------------------------
    x2d = x.reshape(M, in_features)
    M_p = _round_up(M, tm)
    if M_p != M:
        x2d = jnp.pad(x2d, ((0, M_p - M), (0, 0)))

    w12, b12, hidden_p, nh = _pack_w12_3d(w1, b1, w2, b2, th)
    if hidden_p != hidden:
        w3 = jnp.pad(w3, ((0, hidden_p - hidden), (0, 0)))
    if out_p != out_features:
        w3 = jnp.pad(w3, ((0, 0), (0, out_p - out_features)))
        b3 = jnp.pad(b3, (0, out_p - out_features))
    w3_3d = w3.reshape(nh, th, out_p)          # contiguous per-k weight DMA
    b3r = b3.reshape(1, out_p)

    nm = M_p // tm
    grid = (nm, nh)

    vmem_est = _vmem_est(tm, th)
    vmem_limit = int(max(32 * 1024 * 1024,
                         min(budget, vmem_est * 5 // 4)))
    vmem_limit = max(vmem_limit, vmem_est)

    cost = pl.CostEstimate(
        flops=2 * M * in_features * 2 * hidden + 2 * M * hidden * out_features,
        transcendentals=M * hidden,
        bytes_accessed=int(M * in_features * dsz + M * out_features * dsz
                           + nm * (w12.size + w3_3d.size) * wsz
                           + (b12.size + b3r.size) * wsz),
    )

    out2d = pl.pallas_call(
        partial(_swiglu_kernel, th=th),
        out_shape=jax.ShapeDtypeStruct((M_p, out_p), x.dtype),
        grid_spec=pltpu.PrefetchScalarGridSpec(
            num_scalar_prefetch=0,
            grid=grid,
            in_specs=[
                pl.BlockSpec((tm, in_features), lambda i, k: (i, 0)),         # x
                pl.BlockSpec((None, in_features, 2 * th),
                             lambda i, k: (k, 0, 0)),                         # w12
                pl.BlockSpec((None, 1, 2 * th), lambda i, k: (k, 0, 0)),      # b12
                pl.BlockSpec((None, th, out_p), lambda i, k: (k, 0, 0)),      # w3
                pl.BlockSpec((1, out_p), lambda i, k: (0, 0)),                # b3
            ],
            out_specs=pl.BlockSpec((tm, out_p), lambda i, k: (i, 0)),
            scratch_shapes=[pltpu.VMEM((tm, out_p), jnp.float32)],
        ),
        compiler_params=pltpu.CompilerParams(
            dimension_semantics=("parallel", "arbitrary"),
            vmem_limit_bytes=vmem_limit,
        ),
        cost_estimate=cost,
    )(x2d, w12, b12, w3_3d, b3r)

    out2d = out2d[:M, :out_features]
    return out2d.reshape(*lead_shape, out_features)


def init_swiglu_params(key, in_features, hidden_features, out_features,
                       dtype=jnp.float32):
    """Deterministic init mimicking nn.Linear (uniform in +-1/sqrt(fan_in)).
    Returns weights already transposed to [in, out] layout for the kernel."""
    k12w, k12b, k3w, k3b = jax.random.split(key, 4)
    bound12 = 1.0 / math.sqrt(in_features)
    w12 = jax.random.uniform(k12w, (2 * hidden_features, in_features),
                             minval=-bound12, maxval=bound12, dtype=dtype)
    b12 = jax.random.uniform(k12b, (2 * hidden_features,),
                             minval=-bound12, maxval=bound12, dtype=dtype)
    w1_t, w2_t = w12[:hidden_features], w12[hidden_features:]   # [hidden, in]
    b1, b2 = b12[:hidden_features], b12[hidden_features:]
    bound3 = 1.0 / math.sqrt(hidden_features)
    w3_t = jax.random.uniform(k3w, (out_features, hidden_features),
                              minval=-bound3, maxval=bound3, dtype=dtype)
    b3 = jax.random.uniform(k3b, (out_features,),
                            minval=-bound3, maxval=bound3, dtype=dtype)
    return w1_t.T, b1, w2_t.T, b2, w3_t.T, b3


def swiglu_reference(x, w1, b1, w2, b2, w3, b3):
    x1 = x @ w1 + b1
    x2 = x @ w2 + b2
    hidden = jax.nn.silu(x1) * x2
    return hidden @ w3 + b3


if __name__ == "__main__":
    # Small shapes consistent with the module: batch=2, seq=8, in=64, hidden=256.
    batch, seq = 2, 8
    in_features, hidden_features = 64, 256
    out_features = in_features

    key = jax.random.PRNGKey(0)
    kx, kp = jax.random.split(key)
    x = jax.random.normal(kx, (batch, seq, in_features), dtype=jnp.float32)
    w1, b1, w2, b2, w3, b3 = init_swiglu_params(
        kp, in_features, hidden_features, out_features, dtype=jnp.float32)

    ref = swiglu_reference(x, w1, b1, w2, b2, w3, b3)

    # f32, small explicit tiles so both grid axes (M tiles + hidden chunks),
    # the accumulator init/finalize path and the out-padding path are used.
    out = jax.block_until_ready(swiglu_pallas(x, w1, b1, w2, b2, w3, b3,
                                              tm=8, th=128))
    assert out.shape == (batch, seq, out_features)
    assert jnp.allclose(out, ref, atol=1e-5, rtol=1e-5), "f32 (tiled) mismatch"

    # f32, default (auto-clamped, chip-adaptive) tiles.
    out_d = jax.block_until_ready(swiglu_pallas(x, w1, b1, w2, b2, w3, b3))
    assert jnp.allclose(out_d, ref, atol=1e-5, rtol=1e-5), "f32 (default) mismatch"

    # bf16 operands (recommended MXU path, especially on v5e); acc stays f32.
    bf = jnp.bfloat16
    args_bf = [a.astype(bf) for a in (x, w1, b1, w2, b2, w3, b3)]
    out_bf = jax.block_until_ready(swiglu_pallas(*args_bf, tm=8, th=128))
    ref_bf = swiglu_reference(*[a.astype(jnp.float32) for a in args_bf])
    assert jnp.allclose(out_bf.astype(jnp.float32), ref_bf,
                        atol=0.1, rtol=0.1), "bf16 mismatch"

    print("KERNEL_OK")
</pallas_src>

<mosaic_0001>
module attributes {stable_mosaic.version = 11 : i64} {
  func.func @_swiglu_kernel(%arg0: i32, %arg1: i32, %arg2: memref<8x64xf32, #tpu.memory_space<vmem>>, %arg3: memref<1x64x256xf32, #tpu.memory_space<vmem>>, %arg4: memref<1x1x256xf32, #tpu.memory_space<vmem>>, %arg5: memref<1x128x128xf32, #tpu.memory_space<vmem>>, %arg6: memref<1x128xf32, #tpu.memory_space<vmem>>, %arg7: memref<8x128xf32, #tpu.memory_space<vmem>>, %arg8: memref<8x128xf32, #tpu.memory_space<vmem>>) attributes {dimension_semantics = [#tpu.dimension_semantics<parallel>, #tpu.dimension_semantics<arbitrary>], iteration_bounds = array<i64: 2, 2>, scalar_prefetch = 0 : i64, scratch_operands = 1 : i64, tpu.core_type = #tpu.core_type<tc>, window_params = [{transform_indices = @transform_0, window_bounds = array<i64: 8, 64>}, {transform_indices = @transform_1, window_bounds = array<i64: 1, 64, 256>}, {transform_indices = @transform_2, window_bounds = array<i64: 1, 1, 256>}, {transform_indices = @transform_3, window_bounds = array<i64: 1, 128, 128>}, {pipeline_mode = #tpu.pipeline_mode<synchronous>, transform_indices = @transform_4, window_bounds = array<i64: 1, 128>}, {transform_indices = @transform_5, window_bounds = array<i64: 8, 128>}]} {
    %c0_i32 = arith.constant 0 : i32
    %0 = arith.cmpi eq, %arg1, %c0_i32 : i32
    %1 = arith.extui %0 : i1 to i32
    %c0_i32_0 = arith.constant 0 : i32
    %2 = arith.cmpi ne, %1, %c0_i32_0 : i32
    scf.if %2 {
      %cst_24 = arith.constant 0.000000e+00 : f32
      %34 = vector.broadcast %cst_24 : f32 to vector<8x128xf32>
      %c0_25 = arith.constant 0 : index
      %c0_26 = arith.constant 0 : index
      %35 = vector.load %arg8[%c0_25, %c0_26] : memref<8x128xf32, #tpu.memory_space<vmem>>, vector<8x128xf32>
      tpu.vector_store %arg8[%c0_25, %c0_26], %34 {strides = array<i32>} : memref<8x128xf32, #tpu.memory_space<vmem>>, vector<8x128xf32>,
    } else {
    }
    %c0 = arith.constant 0 : index
    %c0_1 = arith.constant 0 : index
    %3 = vector.load %arg2[%c0, %c0_1] : memref<8x64xf32, #tpu.memory_space<vmem>>, vector<8x64xf32>
    %c0_2 = arith.constant 0 : index
    %c0_3 = arith.constant 0 : index
    %c0_4 = arith.constant 0 : index
    %4 = vector.load %arg3[%c0_2, %c0_3, %c0_4] : memref<1x64x256xf32, #tpu.memory_space<vmem>>, vector<1x64x128xf32>
    %5 = vector.shape_cast %4 : vector<1x64x128xf32> to vector<64x128xf32>
    %cst = arith.constant dense<0.000000e+00> : vector<8x128xf32>
    %6 = tpu.matmul %3, %5, %cst {dimension_numbers = #tpu.dot_dimension_numbers<[1], [0], [0], [1], [0, 0, 1, 1], [], []>} : vector<8x64xf32>, vector<64x128xf32>, vector<8x128xf32> -> vector<8x128xf32>
    %c0_5 = arith.constant 0 : index
    %c0_6 = arith.constant 0 : index
    %c0_7 = arith.constant 0 : index
    %7 = vector.load %arg4[%c0_5, %c0_6, %c0_7] : memref<1x1x256xf32, #tpu.memory_space<vmem>>, vector<1x1x128xf32>
    %8 = vector.shape_cast %7 : vector<1x1x128xf32> to vector<1x128xf32>
    %9 = vector.broadcast %8 : vector<1x128xf32> to vector<8x128xf32>
    %10 = arith.addf %6, %9 : vector<8x128xf32>
    %11 = arith.negf %10 : vector<8x128xf32>
    %12 = math.exp %11 : vector<8x128xf32>
    %cst_8 = arith.constant 1.000000e+00 : f32
    %13 = vector.broadcast %cst_8 : f32 to vector<8x128xf32>
    %14 = arith.addf %13, %12 : vector<8x128xf32>
    %15 = arith.divf %13, %14 : vector<8x128xf32>
    %16 = arith.mulf %10, %15 : vector<8x128xf32>
    %c0_9 = arith.constant 0 : index
    %c0_10 = arith.constant 0 : index
    %c128 = arith.constant 128 : index
    %17 = vector.load %arg3[%c0_9, %c0_10, %c128] : memref<1x64x256xf32, #tpu.memory_space<vmem>>, vector<1x64x128xf32>
    %18 = vector.shape_cast %17 : vector<1x64x128xf32> to vector<64x128xf32>
    %cst_11 = arith.constant dense<0.000000e+00> : vector<8x128xf32>
    %19 = tpu.matmul %3, %18, %cst_11 {dimension_numbers = #tpu.dot_dimension_numbers<[1], [0], [0], [1], [0, 0, 1, 1], [], []>} : vector<8x64xf32>, vector<64x128xf32>, vector<8x128xf32> -> vector<8x128xf32>
    %c0_12 = arith.constant 0 : index
    %c0_13 = arith.constant 0 : index
    %c128_14 = arith.constant 128 : index
    %20 = vector.load %arg4[%c0_12, %c0_13, %c128_14] : memref<1x1x256xf32, #tpu.memory_space<vmem>>, vector<1x1x128xf32>
    %21 = vector.shape_cast %20 : vector<1x1x128xf32> to vector<1x128xf32>
    %22 = vector.broadcast %21 : vector<1x128xf32> to vector<8x128xf32>
    %23 = arith.addf %19, %22 : vector<8x128xf32>
    %24 = arith.mulf %16, %23 : vector<8x128xf32>
    %c0_15 = arith.constant 0 : index
    %c0_16 = arith.constant 0 : index
    %25 = vector.load %arg8[%c0_15, %c0_16] : memref<8x128xf32, #tpu.memory_space<vmem>>, vector<8x128xf32>
    %c0_17 = arith.constant 0 : index
    %c0_18 = arith.constant 0 : index
    %c0_19 = arith.constant 0 : index
    %26 = vector.load %arg5[%c0_17, %c0_18, %c0_19] : memref<1x128x128xf32, #tpu.memory_space<vmem>>, vector<1x128x128xf32>
    %27 = vector.shape_cast %26 : vector<1x128x128xf32> to vector<128x128xf32>
    %cst_20 = arith.constant dense<0.000000e+00> : vector<8x128xf32>
    %28 = tpu.matmul %24, %27, %cst_20 {dimension_numbers = #tpu.dot_dimension_numbers<[1], [0], [0], [1], [0, 0, 1, 1], [], []>} : vector<8x128xf32>, vector<128x128xf32>, vector<8x128xf32> -> vector<8x128xf32>
    %29 = arith.addf %25, %28 : vector<8x128xf32>
    %c0_21 = arith.constant 0 : index
    %c0_22 = arith.constant 0 : index
    %30 = vector.load %arg8[%c0_21, %c0_22] : memref<8x128xf32, #tpu.memory_space<vmem>>, vector<8x128xf32>
    tpu.vector_store %arg8[%c0_21, %c0_22], %29 {strides = array<i32>} : memref<8x128xf32, #tpu.memory_space<vmem>>, vector<8x128xf32>,
    %c1_i32 = arith.constant 1 : i32
    %31 = arith.cmpi eq, %arg1, %c1_i32 : i32
    %32 = arith.extui %31 : i1 to i32
    %c0_i32_23 = arith.constant 0 : i32
    %33 = arith.cmpi ne, %32, %c0_i32_23 : i32
    scf.if %33 {
      %c0_24 = arith.constant 0 : index
      %c0_25 = arith.constant 0 : index
      %34 = vector.load %arg8[%c0_24, %c0_25] : memref<8x128xf32, #tpu.memory_space<vmem>>, vector<8x128xf32>
      %c0_26 = arith.constant 0 : index
      %c0_27 = arith.constant 0 : index
      %35 = vector.load %arg6[%c0_26, %c0_27] : memref<1x128xf32, #tpu.memory_space<vmem>>, vector<1x128xf32>
      %36 = vector.broadcast %35 : vector<1x128xf32> to vector<8x128xf32>
      %37 = arith.addf %34, %36 : vector<8x128xf32>
      %c0_28 = arith.constant 0 : index
      %c0_29 = arith.constant 0 : index
      %38 = vector.load %arg7[%c0_28, %c0_29] : memref<8x128xf32, #tpu.memory_space<vmem>>, vector<8x128xf32>
      tpu.vector_store %arg7[%c0_28, %c0_29], %37 {strides = array<i32>} : memref<8x128xf32, #tpu.memory_space<vmem>>, vector<8x128xf32>,
    } else {
    }
    return
  }
  func.func @transform_0(%arg0: i32, %arg1: i32) -> (i32, i32) {
    %c0_i32 = arith.constant 0 : i32
    %c0_i32_0 = arith.constant 0 : i32
    return %arg0, %c0_i32 : i32, i32
  }
  func.func @transform_1(%arg0: i32, %arg1: i32) -> (i32, i32, i32) {
    %c0_i32 = arith.constant 0 : i32
    %c0_i32_0 = arith.constant 0 : i32
    %c0_i32_1 = arith.constant 0 : i32
    return %arg1, %c0_i32, %c0_i32_0 : i32, i32, i32
  }
  func.func @transform_2(%arg0: i32, %arg1: i32) -> (i32, i32, i32) {
    %c0_i32 = arith.constant 0 : i32
    %c0_i32_0 = arith.constant 0 : i32
    %c0_i32_1 = arith.constant 0 : i32
    return %arg1, %c0_i32, %c0_i32_0 : i32, i32, i32
  }
  func.func @transform_3(%arg0: i32, %arg1: i32) -> (i32, i32, i32) {
    %c0_i32 = arith.constant 0 : i32
    %c0_i32_0 = arith.constant 0 : i32
    %c0_i32_1 = arith.constant 0 : i32
    return %arg1, %c0_i32, %c0_i32_0 : i32, i32, i32
  }
  func.func @transform_4(%arg0: i32, %arg1: i32) -> (i32, i32) {
    %c0_i32 = arith.constant 0 : i32
    %c0_i32_0 = arith.constant 0 : i32
    %c0_i32_1 = arith.constant 0 : i32
    return %c0_i32, %c0_i32_0 : i32, i32
  }
  func.func @transform_5(%arg0: i32, %arg1: i32) -> (i32, i32) {
    %c0_i32 = arith.constant 0 : i32
    %c0_i32_0 = arith.constant 0 : i32
    return %arg0, %c0_i32 : i32, i32
  }
}

</mosaic_0001>

<llo_original>
// kernel: tpu_custom_call.1
$region0: #{tpu_custom_call.1}
  #allocation0 [shape = 'u32[]', space=smem, size = 0x4, offset = 0x4, fixed_abs, tag = 'smem constant byte address 0x4 - core index']
  #allocation1 [shape = 'u32[144,128]{1,0:T(1,128)}', space=vmem, size = 0x12000, scoped, tag = 'internal scratch']
  #allocation2 [shape = 'f32[8,128]{1,0:T(8,128)}', space=vmem, size = 0x1000, scoped, tag = 'scratch operand']
  %s0 = inlined_call_operand.hbm [shape: f32[16,64], index: 0, kind: input, shape index: {}]
  %s1 = inlined_call_operand.hbm [shape: f32[2,64,256], index: 1, kind: input, shape index: {}]
  %s2 = inlined_call_operand.vmem [shape: f32[2,1,256], index: 2, kind: input, shape index: {}]
  %s3 = inlined_call_operand.hbm [shape: f32[2,128,128], index: 3, kind: input, shape index: {}]
  %s4 = inlined_call_operand.vmem [shape: f32[1,128], index: 4, kind: input, shape index: {}]
  %s5 = inlined_call_operand.hbm [shape: f32[16,128], index: 5, kind: output, shape index: {}]
  %s6 = sld [smem:[#allocation0]]
  $region73: #{tpu_custom_call.1} parent=0
    _
  %s8 = ssub.s32 1, %s6
  %s9 = scalar_select 0, %s8, %s6
  $region1: #{tpu_custom_call.1} parent=0
    #allocation3 [shape = 'u8[8192]{0}', space=vmem, size = 0x2000, scoped, tag = 'input window, operand 0']
    #allocation4 [shape = 's32[2]{0}', space=sflag, size = 0x8, scoped, tag = 'scoped memory for tpu_custom_call.1']
    #allocation5 [shape = 's32[2]{0}', space=sflag, size = 0x8, scoped, tag = 'scoped memory for tpu_custom_call.1']
    #allocation6 [shape = 'u8[131072]{0}', space=vmem, size = 0x20000, scoped, tag = 'input window, operand 1']
    #allocation7 [shape = 's32[2]{0}', space=sflag, size = 0x8, scoped, tag = 'scoped memory for tpu_custom_call.1']
    #allocation8 [shape = 'u8[131072]{0}', space=vmem, size = 0x20000, scoped, tag = 'input window, operand 3']
    #allocation9 [shape = 'u8[8192]{0}', space=vmem, size = 0x2000, scoped, tag = 'output window, operand 0']
    %10 = vsyncpa [#allocation4], 0
    %s11 = scalar_lea.sflag [#allocation4], 1
    %12 = vsyncpa %s11, 0
    %13 = vsyncpa [#allocation7], 0
    %s14 = scalar_lea.sflag [#allocation7], 1
    %15 = vsyncpa %s14, 0
    %16 = vsyncpa [#allocation5], 0
    %s17 = scalar_lea.sflag [#allocation5], 1
    %18 = vsyncpa %s17, 0
    loop: start=0, step=1, limit=6
    $region2: #{tpu_custom_call.1} parent=1 // loop_pre_header
      _
    $region3: #{tpu_custom_call.1} parent=1 // loop_header
      %s20 = sphi 0, %s24
      %p21 = scmp.ge.s32.totalorder %s20, 6
      %s27 = sphi 0, %s39
      %s28 = sphi 0, %s35
      %s29 = sphi 0, %s27
      %s30 = sphi 0, %s28
      %s31 = sphi 0, %s29
      %s32 = sphi 0, %s30
      %s42 = sphi 0, %s44
      %s45 = sphi 0, %s42
      %s46 = sphi 0, %s45
      %s62 = sphi 0, %s46
      %s68 = sphi 0, %s70
      %s71 = sphi 0, %s68
      %s72 = sphi 0, %s71
      %s88 = sphi 0, %s72
      %s94 = sphi 0, %s96
      %s97 = sphi 0, %s94
      %s98 = sphi 0, %s97
      %s114 = sphi 0, %s98
      %s120 = sphi 0, %s122
      %s123 = sphi 0, %s120
      %s124 = sphi 0, %s123
      %s140 = sphi 0, %s124
      %s144 = sphi 0, %s144
      %s146 = sphi 0, %s144
      %s147 = sphi 0, %s146
      %s161 = sphi 0, %s147
      %s167 = sphi 0, %s169
      %s170 = sphi 0, %s167
      %s171 = sphi 0, %s170
      %s187 = sphi 0, %s171
    $region4: #{tpu_custom_call.1} parent=1 // loop_header_branch
      %23 = sbr.rel (%p21) target = $region8
    $region5: #{tpu_custom_call.1} parent=1 // loop_body
      %s25 = ssub.s32 %s20, 1
      %s26 = ssub.s32 %s20, 2
      %s33 = sadd.s32 1, %s28
      %p34 = scmp.ge.s32.totalorder %s33, 2
      %s35 = scalar_select %p34, 0, %s33
      %s36 = sadd.s32 1, %s27
      %s37 = scalar_select %p34, %s36, %s27
      %p38 = scmp.ge.s32.totalorder %s37, 2
      %s39 = scalar_select %p38, 0, %s37
      %s40 = ssub.s32 %s27, %s39
      %p41 = scmp.eq.s32.totalorder %s40, 0
      %s43 = sadd.s32 %s42, 1
      %s44 = scalar_select %p41, %s42, %s43
      %p47 = pneg %p41
      %p48 = scmp.eq.s32.totalorder %s20, 3
      %p49 = por %p47, %p48
      %p50 = scmp.ne.s32.totalorder %s42, %s45
      %p51 = scmp.eq.s32.totalorder %s20, 0
      %p52 = por %p50, %p51
      %p53 = scmp.ne.s32.totalorder %s42, %s45
      %p54 = scmp.eq.s32.totalorder %s25, 3
      %p55 = por %p53, %p54
      %p56 = scmp.ne.s32.totalorder %s45, %s46
      %p57 = scmp.eq.s32.totalorder %s25, 0
      %p58 = por %p56, %p57
      %p59 = scmp.ne.s32.totalorder %s45, %s46
      %p60 = scmp.eq.s32.totalorder %s26, 3
      %p61 = por %p59, %p60
      %p63 = scmp.ne.s32.totalorder %s46, %s62
      %p64 = scmp.eq.s32.totalorder %s26, 0
      %p65 = por %p63, %p64
      %s66 = ssub.s32 %s28, %s35
      %p67 = scmp.eq.s32.totalorder %s66, 0
      %s69 = sadd.s32 %s68, 1
      %s70 = scalar_select %p67, %s68, %s69
      %p73 = pneg %p67
      %p74 = scmp.eq.s32.totalorder %s20, 3
      %p75 = por %p73, %p74
      %p76 = scmp.ne.s32.totalorder %s68, %s71
      %p77 = scmp.eq.s32.totalorder %s20, 0
      %p78 = por %p76, %p77
      %p79 = scmp.ne.s32.totalorder %s68, %s71
      %p80 = scmp.eq.s32.totalorder %s25, 3
      %p81 = por %p79, %p80
      %p82 = scmp.ne.s32.totalorder %s71, %s72
      %p83 = scmp.eq.s32.totalorder %s25, 0
      %p84 = por %p82, %p83
      %p85 = scmp.ne.s32.totalorder %s71, %s72
      %p86 = scmp.eq.s32.totalorder %s26, 3
      %p87 = por %p85, %p86
      %p89 = scmp.ne.s32.totalorder %s72, %s88
      %p90 = scmp.eq.s32.totalorder %s26, 0
      %p91 = por %p89, %p90
      %s92 = ssub.s32 %s28, %s35
      %p93 = scmp.eq.s32.totalorder %s92, 0
      %s95 = sadd.s32 %s94, 1
      %s96 = scalar_select %p93, %s94, %s95
      %p99 = pneg %p93
      %p100 = scmp.eq.s32.totalorder %s20, 3
      %p101 = por %p99, %p100
      %p102 = scmp.ne.s32.totalorder %s94, %s97
      %p103 = scmp.eq.s32.totalorder %s20, 0
      %p104 = por %p102, %p103
      %p105 = scmp.ne.s32.totalorder %s94, %s97
      %p106 = scmp.eq.s32.totalorder %s25, 3
      %p107 = por %p105, %p106
      %p108 = scmp.ne.s32.totalorder %s97, %s98
      %p109 = scmp.eq.s32.totalorder %s25, 0
      %p110 = por %p108, %p109
      %p111 = scmp.ne.s32.totalorder %s97, %s98
      %p112 = scmp.eq.s32.totalorder %s26, 3
      %p113 = por %p111, %p112
      %p115 = scmp.ne.s32.totalorder %s98, %s114
      %p116 = scmp.eq.s32.totalorder %s26, 0
      %p117 = por %p115, %p116
      %s118 = ssub.s32 %s28, %s35
      %p119 = scmp.eq.s32.totalorder %s118, 0
      %s121 = sadd.s32 %s120, 1
      %s122 = scalar_select %p119, %s120, %s121
      %p125 = pneg %p119
      %p126 = scmp.eq.s32.totalorder %s20, 3
      %p127 = por %p125, %p126
      %p128 = scmp.ne.s32.totalorder %s120, %s123
      %p129 = scmp.eq.s32.totalorder %s20, 0
      %p130 = por %p128, %p129
      %p131 = scmp.ne.s32.totalorder %s120, %s123
      %p132 = scmp.eq.s32.totalorder %s25, 3
      %p133 = por %p131, %p132
      %p134 = scmp.ne.s32.totalorder %s123, %s124
      %p135 = scmp.eq.s32.totalorder %s25, 0
      %p136 = por %p134, %p135
      %p137 = scmp.ne.s32.totalorder %s123, %s124
      %p138 = scmp.eq.s32.totalorder %s26, 3
      %p139 = por %p137, %p138
      %p141 = scmp.ne.s32.totalorder %s124, %s140
      %p142 = scmp.eq.s32.totalorder %s26, 0
      %p143 = por %p141, %p142
      %s145 = sadd.s32 %s144, 1
      %p148 = scmp.eq.s32.totalorder %s20, 3
      %p149 = scmp.ne.s32.totalorder %s144, %s146
      %p150 = scmp.eq.s32.totalorder %s20, 0
      %p151 = por %p149, %p150
      %p152 = scmp.ne.s32.totalorder %s144, %s146
      %p153 = scmp.eq.s32.totalorder %s25, 3
      %p154 = por %p152, %p153
      %p155 = scmp.ne.s32.totalorder %s146, %s147
      %p156 = scmp.eq.s32.totalorder %s25, 0
      %p157 = por %p155, %p156
      %p158 = scmp.ne.s32.totalorder %s146, %s147
      %p159 = scmp.eq.s32.totalorder %s26, 3
      %p160 = por %p158, %p159
      %p162 = scmp.ne.s32.totalorder %s147, %s161
      %p163 = scmp.eq.s32.totalorder %s26, 0
      %p164 = por %p162, %p163
      %s165 = ssub.s32 %s27, %s39
      %p166 = scmp.eq.s32.totalorder %s165, 0
      %s168 = sadd.s32 %s167, 1
      %s169 = scalar_select %p166, %s167, %s168
      %p172 = pneg %p166
      %p173 = scmp.eq.s32.totalorder %s20, 3
      %p174 = por %p172, %p173
      %p175 = scmp.ne.s32.totalorder %s167, %s170
      %p176 = scmp.eq.s32.totalorder %s20, 0
      %p177 = por %p175, %p176
      %p178 = scmp.ne.s32.totalorder %s167, %s170
      %p179 = scmp.eq.s32.totalorder %s25, 3
      %p180 = por %p178, %p179
      %p181 = scmp.ne.s32.totalorder %s170, %s171
      %p182 = scmp.eq.s32.totalorder %s25, 0
      %p183 = por %p181, %p182
      %p184 = scmp.ne.s32.totalorder %s170, %s171
      %p185 = scmp.eq.s32.totalorder %s26, 3
      %p186 = por %p184, %p185
      %p188 = scmp.ne.s32.totalorder %s171, %s187
      %p189 = scmp.eq.s32.totalorder %s26, 0
      %p190 = por %p188, %p189
      %p191 = scmp.le.s32.totalorder 1, %s20
      %p192 = scmp.lt.s32.totalorder %s20, 5
      %p193 = pnand %p191, %p192
      %p194 = pneg %p193
      // Predicated region
      $region9: #{tpu_custom_call.1} parent=5 // pred_check
        _
      $region10: #{tpu_custom_call.1} parent=5 // pred_check_branch
        %196 = sbr.rel (%p193) target = $region12
      $region11: #{tpu_custom_call.1} parent=5 // pred_region
        %s197 = ssub.s32 %s20, 1
        // Predicated region
        $region13: #{tpu_custom_call.1} parent=11 // pred_check
          %p198 = pneg %p157
        $region14: #{tpu_custom_call.1} parent=11 // pred_check_branch
          %200 = sbr.rel (%p198) target = $region16
        $region15: #{tpu_custom_call.1} parent=11 // pred_region
          _
        $region16: #{tpu_custom_call.1} parent=11 // pred_fallthru
          _
      $region12: #{tpu_custom_call.1} parent=5 // pred_fallthru
        _
      %p201 = scmp.lt.s32.totalorder %s20, 4
      // Predicated region
      $region17: #{tpu_custom_call.1} parent=5 // pred_check
        %p202 = pneg %p201
      $region18: #{tpu_custom_call.1} parent=5 // pred_check_branch
        %204 = sbr.rel (%p202) target = $region20
      $region19: #{tpu_custom_call.1} parent=5 // pred_region
        // Predicated region
        $region21: #{tpu_custom_call.1} parent=19 // pred_check
          %p205 = pneg %p52
        $region22: #{tpu_custom_call.1} parent=19 // pred_check_branch
          %207 = sbr.rel (%p205) target = $region24
        $region23: #{tpu_custom_call.1} parent=19 // pred_region
          %s208 = sand.u32 %s42, 1
          %s209 = scalar_lea.sflag [#allocation4], %s208
          %s210 = sand.u32 %s42, 1
          %s211 = smul.addr %s210, 8
          %s212 = scalar_lea.vmem [#allocation3], %s211
          %s214 = ssub.s32 128, 128
          %215 = vsyncadd %s209, %s214
          %s216 = smul.addr %s27, 128
          %s217 = scalar_lea.hbm %s0, %s216
          %s219 = sshll.u32 %s212, 4
          %s220 = int_to_ptr.vmem [resolvable:$true] %s219
          %222 = dma.hbm_to_vmem [thread:$0]  %s217, 128, %s220, %s209
        $region24: #{tpu_custom_call.1} parent=19 // pred_fallthru
          _
        // Predicated region
        $region25: #{tpu_custom_call.1} parent=19 // pred_check
          %p223 = pneg %p78
        $region26: #{tpu_custom_call.1} parent=19 // pred_check_branch
          %225 = sbr.rel (%p223) target = $region28
        $region27: #{tpu_custom_call.1} parent=19 // pred_region
          %s226 = sand.u32 %s20, 1
          %s227 = scalar_lea.sflag [#allocation7], %s226
          %s228 = sand.u32 %s68, 1
          %s229 = smul.addr %s228, 128
          %s230 = scalar_lea.vmem [#allocation6], %s229
          %s232 = ssub.s32 2048, 2048
          %233 = vsyncadd %s227, %s232
          %s234 = smul.addr %s28, 16
          %s235 = smul.addr %s234, 128
          %s236 = scalar_lea.hbm %s1, %s235
          %s237 = sshll.u32 %s230, 4
          %s238 = int_to_ptr.vmem [resolvable:$true] %s237
          %243 = dma.hbm_to_vmem [thread:$0]  %s236, 2048, %s238, %s227, 256, 256, 16
        $region28: #{tpu_custom_call.1} parent=19 // pred_fallthru
          _
        // Predicated region
        $region29: #{tpu_custom_call.1} parent=19 // pred_check
          %p244 = pneg %p104
        $region30: #{tpu_custom_call.1} parent=19 // pred_check_branch
          %246 = sbr.rel (%p244) target = $region32
        $region31: #{tpu_custom_call.1} parent=19 // pred_region
          %p247 = scmp.lt.s32.totalorder %s28, 1
          %s248 = scalar_select %p247, %s28, 1
          %s249 = smul.addr %s248, 2
          %s250 = scalar_lea.vmem %s2, %s249
        $region32: #{tpu_custom_call.1} parent=19 // pred_fallthru
          _
        // Predicated region
        $region33: #{tpu_custom_call.1} parent=19 // pred_check
          %p251 = pneg %p130
        $region34: #{tpu_custom_call.1} parent=19 // pred_check_branch
          %253 = sbr.rel (%p251) target = $region36
        $region35: #{tpu_custom_call.1} parent=19 // pred_region
          %s254 = sand.u32 %s20, 1
          %s255 = scalar_lea.sflag [#allocation7], %s254
          %s256 = sand.u32 %s120, 1
          %s257 = smul.addr %s256, 128
          %s258 = scalar_lea.vmem [#allocation8], %s257
          %s260 = ssub.s32 2048, 2048
          %261 = vsyncadd %s255, %s260
          %s262 = smul.addr %s28, 16
          %s263 = smul.addr %s262, 128
          %s264 = scalar_lea.hbm %s3, %s263
          %s265 = sshll.u32 %s258, 4
          %s266 = int_to_ptr.vmem [resolvable:$true] %s265
          %271 = dma.hbm_to_vmem [thread:$0]  %s264, 2048, %s266, %s255, 128, 128, 8
        $region36: #{tpu_custom_call.1} parent=19 // pred_fallthru
          _
      $region20: #{tpu_custom_call.1} parent=5 // pred_fallthru
        _
      %p272 = scmp.le.s32.totalorder 1, %s20
      %p273 = scmp.lt.s32.totalorder %s20, 5
      %p274 = pnand %p272, %p273
      %p275 = pneg %p274
      // Predicated region
      $region37: #{tpu_custom_call.1} parent=5 // pred_check
        _
      $region38: #{tpu_custom_call.1} parent=5 // pred_check_branch
        %277 = sbr.rel (%p274) target = $region40
      $region39: #{tpu_custom_call.1} parent=5 // pred_region
        %s278 = ssub.s32 %s20, 1
        %s279 = sand.u32 %s45, 1
        %s280 = scalar_lea.sflag [#allocation4], %s279
        %s281 = sand.u32 %s45, 1
        %s282 = smul.addr %s281, 8
        %s283 = scalar_lea.vmem [#allocation3], %s282
        // Predicated region
        $region41: #{tpu_custom_call.1} parent=39 // pred_check
          %p284 = pneg %p58
        $region42: #{tpu_custom_call.1} parent=39 // pred_check_branch
          %286 = sbr.rel (%p284) target = $region44
        $region43: #{tpu_custom_call.1} parent=39 // pred_region
          %287 = dma.done %s280, 128
        $region44: #{tpu_custom_call.1} parent=39 // pred_fallthru
          _
        %s288 = sand.u32 %s25, 1
        %s289 = scalar_lea.sflag [#allocation7], %s288
        %s290 = sand.u32 %s71, 1
        %s291 = smul.addr %s290, 128
        %s292 = scalar_lea.vmem [#allocation6], %s291
        // Predicated region
        $region45: #{tpu_custom_call.1} parent=39 // pred_check
          %p293 = pneg %p84
        $region46: #{tpu_custom_call.1} parent=39 // pred_check_branch
          %295 = sbr.rel (%p293) target = $region48
        $region47: #{tpu_custom_call.1} parent=39 // pred_region
          %296 = dma.done %s289, 2048
        $region48: #{tpu_custom_call.1} parent=39 // pred_fallthru
          _
        %s297 = sand.u32 %s25, 1
        %s298 = scalar_lea.sflag [#allocation7], %s297
        %s299 = sand.u32 %s123, 1
        %s300 = smul.addr %s299, 128
        %s301 = scalar_lea.vmem [#allocation8], %s300
        // Predicated region
        $region49: #{tpu_custom_call.1} parent=39 // pred_check
          %p302 = pneg %p136
        $region50: #{tpu_custom_call.1} parent=39 // pred_check_branch
          %304 = sbr.rel (%p302) target = $region52
        $region51: #{tpu_custom_call.1} parent=39 // pred_region
          %305 = dma.done %s298, 2048
        $region52: #{tpu_custom_call.1} parent=39 // pred_fallthru
          _
        %s306 = sand.u32 %s45, 1
        %s307 = scalar_lea.sflag [#allocation4], %s306
        %s308 = sand.u32 %s45, 1
        %s309 = smul.addr %s308, 8
        %s310 = scalar_lea.vmem [#allocation3], %s309
        %p311 = pneg %p58
        %p312 = pneg %p55
        %s313 = sand.u32 %s25, 1
        %s314 = scalar_lea.sflag [#allocation7], %s313
        %s315 = sand.u32 %s71, 1
        %s316 = smul.addr %s315, 128
        %s317 = scalar_lea.vmem [#allocation6], %s316
        %p318 = pneg %p84
        %p319 = pneg %p81
        %p320 = scmp.lt.s32.totalorder %s30, 1
        %s321 = scalar_select %p320, %s30, 1
        %s322 = smul.addr %s321, 2
        %s323 = scalar_lea.vmem %s2, %s322
        %p324 = pneg %p110
        %p325 = pneg %p107
        %s326 = sand.u32 %s25, 1
        %s327 = scalar_lea.sflag [#allocation7], %s326
        %s328 = sand.u32 %s123, 1
        %s329 = smul.addr %s328, 128
        %s330 = scalar_lea.vmem [#allocation8], %s329
        %p331 = pneg %p136
        %p332 = pneg %p133
        %p333 = pneg %p157
        %p334 = pneg %p154
        %p335 = pneg %p183
        %p336 = pneg %p180
        %s337 = sand.u32 %s170, 1
        %s338 = scalar_lea.sflag [#allocation5], %s337
        %s339 = sand.u32 %s170, 1
        %s340 = smul.addr %s339, 8
        %s341 = scalar_lea.vmem [#allocation9], %s340
        %p342 = scmp.lt.s32.totalorder %s30, 1
        %s343 = scalar_select %p342, %s30, 1
        %s344 = smul.addr %s343, 2
        %s345 = scalar_lea.vmem %s2, %s344
        %p346 = scmp.eq.s32.totalorder %s30, 0
        // Predicated region
        $region53: #{tpu_custom_call.1} parent=39 // pred_check
          %p347 = pneg %p346
        $region54: #{tpu_custom_call.1} parent=39 // pred_check_branch
          %349 = sbr.rel (%p347) target = $region56
        $region55: #{tpu_custom_call.1} parent=39 // pred_region
          %350 = vst [vmem:[#allocation2] sm:$0xff] 0.0
        $region56: #{tpu_custom_call.1} parent=39 // pred_fallthru
          _
        %v351 = vld [vmem:[%s283] sm:$0xff]
        %v352 = vld [vmem:[%s292] sm:$0xff]
        %v353 = vld [vmem:[%s292 + $0x10] sm:$0xff]
        %v354 = vld [vmem:[%s292 + $0x20] sm:$0xff]
        %v355 = vld [vmem:[%s292 + $0x30] sm:$0xff]
        %v356 = vld [vmem:[%s292 + $0x40] sm:$0xff]
        %v357 = vld [vmem:[%s292 + $0x50] sm:$0xff]
        %v358 = vld [vmem:[%s292 + $0x60] sm:$0xff]
        %v359 = vld [vmem:[%s292 + $0x70] sm:$0xff]
        %v360 = vld [vmem:[%s345] sm:$0x1]
        %v362 = vlaneseq
        %v363 = vshrl.u32 %v362, 7
        %v364 = vsub.s32 0, %v363
        %v365 = vrot.slane %v360, %v364
        %vm367 = vcmask 523264
        %v369 = vsel %vm367, %v351, 0
        %371 = vmatprep.subr.mxu0 0.0
        %372 = vmatpush1.msra.mxu0 %v352
        %373 = vmatprep.subr.mxu0 0.0
        %374 = vmatpush1.msra.mxu0 %v353
        %375 = vmatprep.subr.mxu0 0.0
        %376 = vmatpush1.msra.mxu0 %v354
        %377 = vmatprep.subr.mxu0 0.0
        %378 = vmatpush1.msra.mxu0 %v355
        %379 = vmatprep.subr.mxu0 0.0
        %380 = vmatpush1.msra.mxu0 %v356
        %381 = vmatprep.subr.mxu0 0.0
        %382 = vmatpush1.msra.mxu0 %v357
        %383 = vmatprep.subr.mxu0 0.0
        %384 = vmatpush1.msra.mxu0 %v358
        %385 = vmatprep.subr.mxu0 0.0
        %386 = vmatpush1.msra.mxu0 %v359
        %387 = vmatprep.subr.mxu0 0.0
        %388 = vmatpush1.msra.mxu0 0.0
        %389 = vmatprep.subr.mxu0 0.0
        %390 = vmatpush1.msra.mxu0 0.0
        %391 = vmatprep.subr.mxu0 0.0
        %392 = vmatpush1.msra.mxu0 0.0
        %393 = vmatprep.subr.mxu0 0.0
        %394 = vmatpush1.msra.mxu0 0.0
        %395 = vmatprep.subr.mxu0 0.0
        %396 = vmatpush1.msra.mxu0 0.0
        %397 = vmatprep.subr.mxu0 0.0
        %398 = vmatpush1.msra.mxu0 0.0
        %399 = vmatprep.subr.mxu0 0.0
        %400 = vmatpush1.msra.mxu0 0.0
        %401 = vmatprep.subr.mxu0 0.0
        %402 = vmatpush1.msra.mxu0 0.0
        %403 = vmatprep.subr.mxu0 0.0
        %404 = vmatpush1.msra.mxu0 0.0
        %405 = vmatprep.subr.mxu0 0.0
        %406 = vmatpush1.msra.mxu0 0.0
        %407 = vmatprep.subr.mxu0 0.0
        %408 = vmatpush1.msra.mxu0 0.0
        %409 = vmatprep.subr.mxu0 0.0
        %410 = vmatpush1.msra.mxu0 0.0
        %411 = vmatprep.subr.mxu0 0.0
        %412 = vmatpush1.msra.mxu0 0.0
        %413 = vmatprep.subr.mxu0 0.0
        %414 = vmatpush1.msra.mxu0 0.0
        %415 = vmatprep.subr.mxu0 0.0
        %416 = vmatpush1.msra.mxu0 0.0
        %417 = vmatprep.subr.mxu0 0.0
        %418 = vmatpush1.msra.mxu0 0.0
        %419 = vmatprep.subr.mxu0 0.0
        %420 = vmatpush1.msra.mxu0 0.0
        %421 = vmatprep.subr.mxu0 0.0
        %422 = vmatpush1.msra.mxu0 0.0
        %423 = vmatprep.subr.mxu0 0.0
        %424 = vmatpush1.msra.mxu0 0.0
        %425 = vmatprep.subr.mxu0 0.0
        %426 = vmatpush1.msra.mxu0 0.0
        %427 = vmatprep.subr.mxu0 0.0
        %428 = vmatpush1.msra.mxu0 0.0
        %429 = vmatprep.subr.mxu0 0.0
        %430 = vmatpush1.msra.mxu0 0.0
        %431 = vmatprep.subr.mxu0 0.0
        %432 = vmatpush1.msra.mxu0 0.0
        %433 = vmatprep.subr.mxu0 0.0
        %434 = vmatpush1.msra.mxu0 0.0
        %435 = vmatprep.mubr.f32.mxu0 0.0
        %436 = vmatmul.mubr.f32.gmra.mrb[0].mxu0 %v369
        %v437 = vpop.f32.mrb[0].mxu0
        %v438 = vadd.f32 %v365, %v437
        %v439 = vpop.f32.mrb[0].mxu0
        %440 = vdwg.mxu0
        %v441 = vxor.u32 %v438, 2147483648
        %v442 = vmul.f32 %v441, 1.442695
        %v443 = vpow.pop %v442
        %v444 = vadd.f32 %v443, 1.0
        %v445 = vrcp.pop %v444
        %v446 = vmul.f32 1.0, %v445
        %v447 = vmul.f32 %v438, %v446
        %v448 = vld [vmem:[%s292 + $0x8] sm:$0xff]
        %v449 = vld [vmem:[%s292 + $0x18] sm:$0xff]
        %v450 = vld [vmem:[%s292 + $0x28] sm:$0xff]
        %v451 = vld [vmem:[%s292 + $0x38] sm:$0xff]
        %v452 = vld [vmem:[%s292 + $0x48] sm:$0xff]
        %v453 = vld [vmem:[%s292 + $0x58] sm:$0xff]
        %v454 = vld [vmem:[%s292 + $0x68] sm:$0xff]
        %v455 = vld [vmem:[%s292 + $0x78] sm:$0xff]
        %v456 = vld [vmem:[%s345 + $0x1] sm:$0x1]
        %v458 = vlaneseq
        %v459 = vshrl.u32 %v458, 7
        %v460 = vsub.s32 0, %v459
        %v461 = vrot.slane %v456, %v460
        %463 = vmatprep.subr.mxu0 0.0
        %464 = vmatpush1.msra.mxu0 %v448
        %465 = vmatprep.subr.mxu0 0.0
        %466 = vmatpush1.msra.mxu0 %v449
        %467 = vmatprep.subr.mxu0 0.0
        %468 = vmatpush1.msra.mxu0 %v450
        %469 = vmatprep.subr.mxu0 0.0
        %470 = vmatpush1.msra.mxu0 %v451
        %471 = vmatprep.subr.mxu0 0.0
        %472 = vmatpush1.msra.mxu0 %v452
        %473 = vmatprep.subr.mxu0 0.0
        %474 = vmatpush1.msra.mxu0 %v453
        %475 = vmatprep.subr.mxu0 0.0
        %476 = vmatpush1.msra.mxu0 %v454
        %477 = vmatprep.subr.mxu0 0.0
        %478 = vmatpush1.msra.mxu0 %v455
        %479 = vmatprep.subr.mxu0 0.0
        %480 = vmatpush1.msra.mxu0 0.0
        %481 = vmatprep.subr.mxu0 0.0
        %482 = vmatpush1.msra.mxu0 0.0
        %483 = vmatprep.subr.mxu0 0.0
        %484 = vmatpush1.msra.mxu0 0.0
        %485 = vmatprep.subr.mxu0 0.0
        %486 = vmatpush1.msra.mxu0 0.0
        %487 = vmatprep.subr.mxu0 0.0
        %488 = vmatpush1.msra.mxu0 0.0
        %489 = vmatprep.subr.mxu0 0.0
        %490 = vmatpush1.msra.mxu0 0.0
        %491 = vmatprep.subr.mxu0 0.0
        %492 = vmatpush1.msra.mxu0 0.0
        %493 = vmatprep.subr.mxu0 0.0
        %494 = vmatpush1.msra.mxu0 0.0
        %495 = vmatprep.subr.mxu0 0.0
        %496 = vmatpush1.msra.mxu0 0.0
        %497 = vmatprep.subr.mxu0 0.0
        %498 = vmatpush1.msra.mxu0 0.0
        %499 = vmatprep.subr.mxu0 0.0
        %500 = vmatpush1.msra.mxu0 0.0
        %501 = vmatprep.subr.mxu0 0.0
        %502 = vmatpush1.msra.mxu0 0.0
        %503 = vmatprep.subr.mxu0 0.0
        %504 = vmatpush1.msra.mxu0 0.0
        %505 = vmatprep.subr.mxu0 0.0
        %506 = vmatpush1.msra.mxu0 0.0
        %507 = vmatprep.subr.mxu0 0.0
        %508 = vmatpush1.msra.mxu0 0.0
        %509 = vmatprep.subr.mxu0 0.0
        %510 = vmatpush1.msra.mxu0 0.0
        %511 = vmatprep.subr.mxu0 0.0
        %512 = vmatpush1.msra.mxu0 0.0
        %513 = vmatprep.subr.mxu0 0.0
        %514 = vmatpush1.msra.mxu0 0.0
        %515 = vmatprep.subr.mxu0 0.0
        %516 = vmatpush1.msra.mxu0 0.0
        %517 = vmatprep.subr.mxu0 0.0
        %518 = vmatpush1.msra.mxu0 0.0
        %519 = vmatprep.subr.mxu0 0.0
        %520 = vmatpush1.msra.mxu0 0.0
        %521 = vmatprep.subr.mxu0 0.0
        %522 = vmatpush1.msra.mxu0 0.0
        %523 = vmatprep.subr.mxu0 0.0
        %524 = vmatpush1.msra.mxu0 0.0
        %525 = vmatprep.subr.mxu0 0.0
        %526 = vmatpush1.msra.mxu0 0.0
        %527 = vmatprep.mubr.f32.mxu0 0.0
        %528 = vmatmul.mubr.f32.gmra.mrb[0].mxu0 %v369
        %v529 = vpop.f32.mrb[0].mxu0
        %v530 = vadd.f32 %v461, %v529
        %v531 = vpop.f32.mrb[0].mxu0
        %532 = vdwg.mxu0
        %v533 = vmul.f32 %v447, %v530
        %v534 = vld [vmem:[#allocation2] sm:$0xff]
        %v535 = vld [vmem:[%s301] sm:$0xff]
        %v536 = vld [vmem:[%s301 + $0x8] sm:$0xff]
        %v537 = vld [vmem:[%s301 + $0x10] sm:$0xff]
        %v538 = vld [vmem:[%s301 + $0x18] sm:$0xff]
        %v539 = vld [vmem:[%s301 + $0x20] sm:$0xff]
        %v540 = vld [vmem:[%s301 + $0x28] sm:$0xff]
        %v541 = vld [vmem:[%s301 + $0x30] sm:$0xff]
        %v542 = vld [vmem:[%s301 + $0x38] sm:$0xff]
        %v543 = vld [vmem:[%s301 + $0x40] sm:$0xff]
        %v544 = vld [vmem:[%s301 + $0x48] sm:$0xff]
        %v545 = vld [vmem:[%s301 + $0x50] sm:$0xff]
        %v546 = vld [vmem:[%s301 + $0x58] sm:$0xff]
        %v547 = vld [vmem:[%s301 + $0x60] sm:$0xff]
        %v548 = vld [vmem:[%s301 + $0x68] sm:$0xff]
        %v549 = vld [vmem:[%s301 + $0x70] sm:$0xff]
        %v550 = vld [vmem:[%s301 + $0x78] sm:$0xff]
        %551 = vmatprep.subr.mxu0 0.0
        %552 = vmatpush1.msra.mxu0 %v535
        %553 = vmatprep.subr.mxu0 0.0
        %554 = vmatpush1.msra.mxu0 %v536
        %555 = vmatprep.subr.mxu0 0.0
        %556 = vmatpush1.msra.mxu0 %v537
        %557 = vmatprep.subr.mxu0 0.0
        %558 = vmatpush1.msra.mxu0 %v538
        %559 = vmatprep.subr.mxu0 0.0
        %560 = vmatpush1.msra.mxu0 %v539
        %561 = vmatprep.subr.mxu0 0.0
        %562 = vmatpush1.msra.mxu0 %v540
        %563 = vmatprep.subr.mxu0 0.0
        %564 = vmatpush1.msra.mxu0 %v541
        %565 = vmatprep.subr.mxu0 0.0
        %566 = vmatpush1.msra.mxu0 %v542
        %567 = vmatprep.subr.mxu0 0.0
        %568 = vmatpush1.msra.mxu0 %v543
        %569 = vmatprep.subr.mxu0 0.0
        %570 = vmatpush1.msra.mxu0 %v544
        %571 = vmatprep.subr.mxu0 0.0
        %572 = vmatpush1.msra.mxu0 %v545
        %573 = vmatprep.subr.mxu0 0.0
        %574 = vmatpush1.msra.mxu0 %v546
        %575 = vmatprep.subr.mxu0 0.0
        %576 = vmatpush1.msra.mxu0 %v547
        %577 = vmatprep.subr.mxu0 0.0
        %578 = vmatpush1.msra.mxu0 %v548
        %579 = vmatprep.subr.mxu0 0.0
        %580 = vmatpush1.msra.mxu0 %v549
        %581 = vmatprep.subr.mxu0 0.0
        %582 = vmatpush1.msra.mxu0 %v550
        %583 = vmatprep.subr.mxu0 0.0
        %584 = vmatpush1.msra.mxu0 0.0
        %585 = vmatprep.subr.mxu0 0.0
        %586 = vmatpush1.msra.mxu0 0.0
        %587 = vmatprep.subr.mxu0 0.0
        %588 = vmatpush1.msra.mxu0 0.0
        %589 = vmatprep.subr.mxu0 0.0
        %590 = vmatpush1.msra.mxu0 0.0
        %591 = vmatprep.subr.mxu0 0.0
        %592 = vmatpush1.msra.mxu0 0.0
        %593 = vmatprep.subr.mxu0 0.0
        %594 = vmatpush1.msra.mxu0 0.0
        %595 = vmatprep.subr.mxu0 0.0
        %596 = vmatpush1.msra.mxu0 0.0
        %597 = vmatprep.subr.mxu0 0.0
        %598 = vmatpush1.msra.mxu0 0.0
        %599 = vmatprep.subr.mxu0 0.0
        %600 = vmatpush1.msra.mxu0 0.0
        %601 = vmatprep.subr.mxu0 0.0
        %602 = vmatpush1.msra.mxu0 0.0
        %603 = vmatprep.subr.mxu0 0.0
        %604 = vmatpush1.msra.mxu0 0.0
        %605 = vmatprep.subr.mxu0 0.0
        %606 = vmatpush1.msra.mxu0 0.0
        %607 = vmatprep.subr.mxu0 0.0
        %608 = vmatpush1.msra.mxu0 0.0
        %609 = vmatprep.subr.mxu0 0.0
        %610 = vmatpush1.msra.mxu0 0.0
        %611 = vmatprep.subr.mxu0 0.0
        %612 = vmatpush1.msra.mxu0 0.0
        %613 = vmatprep.subr.mxu0 0.0
        %614 = vmatpush1.msra.mxu0 0.0
        %615 = vmatprep.mubr.f32.mxu0 0.0
        %616 = vmatmul.mubr.f32.gmra.mrb[0].mxu0 %v533
        %v617 = vpop.f32.mrb[0].mxu0
        %v618 = vadd.f32 0.0, %v617
        %v619 = vpop.f32.mrb[0].mxu0
        %620 = vdwg.mxu0
        %v621 = vadd.f32 %v534, %v618
        %622 = vst [vmem:[#allocation2] sm:$0xff] %v621
        %p623 = scmp.eq.s32.totalorder %s30, 1
        // Predicated region
        $region57: #{tpu_custom_call.1} parent=39 // pred_check
          %p624 = pneg %p623
        $region58: #{tpu_custom_call.1} parent=39 // pred_check_branch
          %626 = sbr.rel (%p624) target = $region60
        $region59: #{tpu_custom_call.1} parent=39 // pred_region
          %v627 = vld [vmem:[#allocation2] sm:$0xff]
          %v628 = vld [vmem:[%s4] sm:$0x1]
          %v630 = vlaneseq
          %v631 = vshrl.u32 %v630, 7
          %v632 = vsub.s32 0, %v631
          %v633 = vrot.slane %v628, %v632
          %v635 = vadd.f32 %v627, %v633
          %636 = vst [vmem:[%s341] sm:$0xff] %v635
        $region60: #{tpu_custom_call.1} parent=39 // pred_fallthru
          _
        %s637 = sand.u32 %s170, 1
        %s638 = scalar_lea.sflag [#allocation5], %s637
        %s639 = sand.u32 %s170, 1
        %s640 = smul.addr %s639, 8
        %s641 = scalar_lea.vmem [#allocation9], %s640
        // Predicated region
        $region61: #{tpu_custom_call.1} parent=39 // pred_check
          %p642 = pneg %p180
        $region62: #{tpu_custom_call.1} parent=39 // pred_check_branch
          %644 = sbr.rel (%p642) target = $region64
        $region63: #{tpu_custom_call.1} parent=39 // pred_region
          %s646 = ssub.s32 128, 128
          %647 = vsyncadd %s638, %s646
          %s648 = smul.addr %s29, 128
          %s649 = scalar_lea.hbm %s5, %s648
          %s651 = sshll.u32 %s641, 4
          %s652 = int_to_ptr.vmem [resolvable:$true] %s651
          %654 = dma.vmem_to_hbm [thread:$0]  %s652, 128, %s649, %s638
        $region64: #{tpu_custom_call.1} parent=39 // pred_fallthru
          _
      $region40: #{tpu_custom_call.1} parent=5 // pred_fallthru
        _
      %p655 = scmp.le.s32.totalorder 2, %s20
      // Predicated region
      $region65: #{tpu_custom_call.1} parent=5 // pred_check
        %p656 = pneg %p655
      $region66: #{tpu_custom_call.1} parent=5 // pred_check_branch
        %658 = sbr.rel (%p656) target = $region68
      $region67: #{tpu_custom_call.1} parent=5 // pred_region
        %s659 = ssub.s32 %s20, 2
        // Predicated region
        $region69: #{tpu_custom_call.1} parent=67 // pred_check
          %p660 = pneg %p186
        $region70: #{tpu_custom_call.1} parent=67 // pred_check_branch
          %662 = sbr.rel (%p660) target = $region72
        $region71: #{tpu_custom_call.1} parent=67 // pred_region
          %s663 = sand.u32 %s171, 1
          %s664 = scalar_lea.sflag [#allocation5], %s663
          %s665 = sand.u32 %s171, 1
          %s666 = smul.addr %s665, 8
          %s667 = scalar_lea.vmem [#allocation9], %s666
          %668 = dma.done %s664, 128
        $region72: #{tpu_custom_call.1} parent=67 // pred_fallthru
          _
      $region68: #{tpu_custom_call.1} parent=5 // pred_fallthru
        _
    $region6: #{tpu_custom_call.1} parent=1 // loop_footer
      %s24 = sadd.s32 1, %s20
    $region7: #{tpu_custom_call.1} parent=1 // loop_footer_branch
      %19 = sbr.rel target = $region3
    $region8: #{tpu_custom_call.1} parent=1 // loop_exit
      _
    %669 = vsyncpa [#allocation4], 1
    %s670 = scalar_lea.sflag [#allocation4], 1
    %671 = vsyncpa %s670, 1
    %672 = vsyncpa [#allocation7], 1
    %s673 = scalar_lea.sflag [#allocation7], 1
    %674 = vsyncpa %s673, 1
    %675 = vsyncpa [#allocation5], 1
    %s676 = scalar_lea.sflag [#allocation5], 1
    %677 = vsyncpa %s676, 1

</llo_original>
